<compile_context>
chip_gen: v5e
topology: v5e:2x2
jax: 0.10.0
libtpu: 0.0.40
codegen_flags: <defaults>
</compile_context>

<pallas_src>
import functools

import jax
import jax.numpy as jnp
from jax.experimental import pallas as pl
from jax.experimental.pallas import tpu as pltpu

WIDTH = 64
MAX_TILE_N = 16384            # rows per grid step (review: 8192-16384)
VMEM_LIMIT_BYTES = 48 * 1024 * 1024   # explicit scope (v5e default is only 16 MiB)


def _round_up(x, m):
    return (x + m - 1) // m * m


def enc_c_kernel(inp_ref, wb1_ref, w2_ref, b2_ref, w5_ref, b5_ref, out_ref):
    # Merged input block (8, T): row0 = x, row1 = ones, row2 = label, rows 3..7 = 0.
    xa = inp_ref[...]                                  # (8, T) f32
    y = xa[2:3, :]                                     # (1, T) labels

    # fc1 (+ bias fused) on the MXU: (64, 8) @ (8, T) -> (64, T).
    # Label/zero rows of the input hit zero weight columns, so they vanish.
    h1 = jnp.dot(wb1_ref[...], xa, preferred_element_type=jnp.float32)
    h1 = jnp.maximum(h1, 0.0)

    # fc2 on the MXU with bf16 operands, f32 accumulation.
    h2 = jnp.dot(w2_ref[...], h1.astype(jnp.bfloat16),
                 preferred_element_type=jnp.float32)
    h2 = jnp.maximum(h2 + b2_ref[...], 0.0)            # (64, T)

    # fc5 on the MXU: (8, 64) @ (64, T) -> (8, T); only row 0 is the real w5.
    z8 = jnp.dot(w5_ref[...], h2, preferred_element_type=jnp.float32)
    z = z8[0:1, :] + b5_ref[0]                          # (1, T) logits

    # Stable softplus(z); reused for sigmoid and the logit-space BCE.
    sp = jnp.maximum(z, 0.0) + jnp.log1p(jnp.exp(-jnp.abs(z)))
    log_p = z - sp                                      # log(sigmoid(z))
    log_1mp = -sp                                       # log(1 - sigmoid(z))
    pred = jnp.exp(log_p)                               # == sigmoid(z)

    # BCE with torch.nn.BCELoss clamp semantics (log terms >= -100):
    #   y*b + (1-y)*a  ==  a + y*(b - a)   (one fewer VPU op per vreg)
    a = jnp.maximum(log_1mp, -100.0)
    b = jnp.maximum(log_p, -100.0)
    bce = -(a + y * (b - a))

    out_ref[0:1, :] = pred
    out_ref[1:2, :] = bce


@functools.partial(jax.jit, static_argnames=("max_tile",))
def enc_c_forward(x, w1, b1, w2, b2, w5, b5, *, max_tile=MAX_TILE_N):
    n = x.shape[0]
    n_round = _round_up(max(n, 1), 128)
    # Aim for ~8 grid steps when N is large (keeps both v7x TensorCores busy via
    # the "parallel" axis), capped by max_tile for VMEM.
    tile_n = min(max_tile, max(128, _round_up(pl.cdiv(n_round, 8), 128)))
    n_pad = _round_up(n_round, tile_n)
    grid = (n_pad // tile_n,)

    # Single merged, lane-dense input stream.
    packed = jnp.stack([x[:, 0], jnp.ones((n,), jnp.float32), x[:, 1]], axis=0)
    inp = jnp.zeros((8, n_pad), jnp.float32).at[:3, :n].set(packed)

    # Packed fc1 operand: columns [w1 | b1 | 0 ... 0] -> (64, 8).
    wb1 = jnp.zeros((WIDTH, 8), jnp.float32)
    wb1 = wb1.at[:, 0].set(w1[:, 0]).at[:, 1].set(b1)

    w2_bf = w2.astype(jnp.bfloat16)                    # bf16 MXU operand
    b2_col = b2.reshape(WIDTH, 1)
    w5p = jnp.zeros((8, WIDTH), jnp.float32).at[0, :].set(w5[0, :])

    def const(shape):
        return pl.BlockSpec(shape, lambda i: (0, 0))   # VMEM-resident weights

    out = pl.pallas_call(
        enc_c_kernel,
        out_shape=jax.ShapeDtypeStruct((2, n_pad), jnp.float32),
        grid=grid,
        in_specs=[
            pl.BlockSpec((8, tile_n), lambda i: (0, i)),        # merged input
            const((WIDTH, 8)),                                  # [w1 | b1]
            const((WIDTH, WIDTH)),                              # w2 (bf16)
            const((WIDTH, 1)),                                  # b2
            const((8, WIDTH)),                                  # w5 (padded)
            pl.BlockSpec(memory_space=pltpu.MemorySpace.SMEM),  # b5 (1,)
        ],
        out_specs=pl.BlockSpec((2, tile_n), lambda i: (0, i)),  # pred / bce rows
        compiler_params=pltpu.CompilerParams(
            dimension_semantics=("parallel",),
            vmem_limit_bytes=VMEM_LIMIT_BYTES),
    )(inp, wb1, w2_bf, b2_col, w5p, b5)

    pred = out[0, :n].reshape(n, 1)
    loss = jnp.mean(out[1, :n])        # padding sliced off before the mean
    return pred, loss


def init_params(key):
    """Deterministic init mimicking nn.Linear default (U[-1/sqrt(fan_in), +])."""
    k1, k2, k3, k4, k5, k6 = jax.random.split(key, 6)

    def u(k, shape, fan_in):
        bound = 1.0 / jnp.sqrt(fan_in)
        return jax.random.uniform(k, shape, jnp.float32, -bound, bound)

    w1 = u(k1, (WIDTH, 1), 1.0)            # fc1.weight
    b1 = u(k2, (WIDTH,), 1.0)              # fc1.bias
    w2 = u(k3, (WIDTH, WIDTH), float(WIDTH))   # fc2.weight
    b2 = u(k4, (WIDTH,), float(WIDTH))         # fc2.bias
    w5 = u(k5, (1, WIDTH), float(WIDTH))       # fc5.weight
    b5 = u(k6, (1,), float(WIDTH))             # fc5.bias
    return w1, b1, w2, b2, w5, b5


def _reference(x, w1, b1, w2, b2, w5, b5):
    """Pure-JAX f32 reference of the PyTorch forward."""
    input_col = x[:, 0:1]
    label_col = x[:, 1:2]
    h1 = jnp.maximum(input_col @ w1.T + b1, 0.0)
    h2 = jnp.maximum(h1 @ w2.T + b2, 0.0)
    z = h2 @ w5.T + b5
    p = jax.nn.sigmoid(z)
    logp = jnp.maximum(jnp.log(p), -100.0)
    log1mp = jnp.maximum(jnp.log1p(-p), -100.0)
    loss = -jnp.mean(label_col * logp + (1.0 - label_col) * log1mp)
    return p, loss


if __name__ == "__main__":
    key = jax.random.PRNGKey(0)
    k_params, k_in1, k_lab1, k_in2, k_lab2 = jax.random.split(key, 5)
    params = init_params(k_params)

    ok = True
    # Case 1: tiny batch (single grid step).
    # Case 2: N=300 -> multi-step grid + padding/masking path.
    for (n, k_in, k_lab) in ((8, k_in1, k_lab1), (300, k_in2, k_lab2)):
        input_col = jax.random.normal(k_in, (n, 1), jnp.float32)
        label_col = jax.random.uniform(k_lab, (n, 1), jnp.float32)  # labels in [0,1]
        x = jnp.concatenate([input_col, label_col], axis=1)         # (N, 2)

        pred, loss = enc_c_forward(x, *params)
        jax.block_until_ready((pred, loss))

        p_ref, loss_ref = _reference(x, *params)
        # bf16 fc2 operands shift pred/loss at the ~1e-3 level -> loose tolerance.
        assert jnp.allclose(pred, p_ref, atol=2e-2, rtol=2e-2), f"pred mismatch N={n}"
        assert jnp.allclose(loss, loss_ref, atol=2e-2, rtol=2e-2), f"loss mismatch N={n}"
        ok = ok and bool(jnp.isfinite(loss))

    if ok:
        print("KERNEL_OK")
</pallas_src>

<mosaic_0001>
module attributes {stable_mosaic.version = 11 : i64} {
  func.func @enc_c_kernel(%arg0: i32, %arg1: memref<8x128xf32, #tpu.memory_space<vmem>>, %arg2: memref<64x8xf32, #tpu.memory_space<vmem>>, %arg3: memref<64x64xbf16, #tpu.memory_space<vmem>>, %arg4: memref<64x1xf32, #tpu.memory_space<vmem>>, %arg5: memref<8x64xf32, #tpu.memory_space<vmem>>, %arg6: memref<1xf32, #tpu.memory_space<smem>>, %arg7: memref<2x128xf32, #tpu.memory_space<vmem>>) attributes {dimension_semantics = [#tpu.dimension_semantics<parallel>], iteration_bounds = array<i64: 1>, scalar_prefetch = 0 : i64, scratch_operands = 0 : i64, tpu.core_type = #tpu.core_type<tc>, window_params = [{transform_indices = @transform_0, window_bounds = array<i64: 8, 128>}, {pipeline_mode = #tpu.pipeline_mode<synchronous>, transform_indices = @transform_1, window_bounds = array<i64: 64, 8>}, {pipeline_mode = #tpu.pipeline_mode<synchronous>, transform_indices = @transform_2, window_bounds = array<i64: 64, 64>}, {pipeline_mode = #tpu.pipeline_mode<synchronous>, transform_indices = @transform_3, window_bounds = array<i64: 64, 1>}, {pipeline_mode = #tpu.pipeline_mode<synchronous>, transform_indices = @transform_4, window_bounds = array<i64: 8, 64>}, {transform_indices = @transform_5, window_bounds = array<i64: 1>}, {transform_indices = @transform_6, window_bounds = array<i64: 2, 128>}]} {
    %c0 = arith.constant 0 : index
    %c0_0 = arith.constant 0 : index
    %0 = vector.load %arg1[%c0, %c0_0] : memref<8x128xf32, #tpu.memory_space<vmem>>, vector<8x128xf32>
    %1 = vector.extract_strided_slice %0 {offsets = [2, 0], sizes = [1, 128], strides = [1, 1]} : vector<8x128xf32> to vector<1x128xf32>
    %c0_1 = arith.constant 0 : index
    %c0_2 = arith.constant 0 : index
    %2 = vector.load %arg2[%c0_1, %c0_2] : memref<64x8xf32, #tpu.memory_space<vmem>>, vector<64x8xf32>
    %cst = arith.constant dense<0.000000e+00> : vector<64x128xf32>
    %3 = tpu.matmul %2, %0, %cst {dimension_numbers = #tpu.dot_dimension_numbers<[1], [0], [0], [1], [0, 0, 1, 1], [], []>} : vector<64x8xf32>, vector<8x128xf32>, vector<64x128xf32> -> vector<64x128xf32>
    %cst_3 = arith.constant 0.000000e+00 : f32
    %4 = vector.broadcast %cst_3 : f32 to vector<64x128xf32>
    %5 = arith.maximumf %3, %4 : vector<64x128xf32>
    %c0_4 = arith.constant 0 : index
    %c0_5 = arith.constant 0 : index
    %6 = vector.load %arg3[%c0_4, %c0_5] : memref<64x64xbf16, #tpu.memory_space<vmem>>, vector<64x64xbf16>
    %7 = arith.truncf %5 : vector<64x128xf32> to vector<64x128xbf16>
    %cst_6 = arith.constant dense<0.000000e+00> : vector<64x128xf32>
    %8 = tpu.matmul %6, %7, %cst_6 {dimension_numbers = #tpu.dot_dimension_numbers<[1], [0], [0], [1], [0, 0, 1, 1], [], []>} : vector<64x64xbf16>, vector<64x128xbf16>, vector<64x128xf32> -> vector<64x128xf32>
    %c0_7 = arith.constant 0 : index
    %c0_8 = arith.constant 0 : index
    %9 = vector.load %arg4[%c0_7, %c0_8] : memref<64x1xf32, #tpu.memory_space<vmem>>, vector<64x1xf32>
    %10 = vector.broadcast %9 : vector<64x1xf32> to vector<64x128xf32>
    %11 = arith.addf %8, %10 : vector<64x128xf32>
    %cst_9 = arith.constant 0.000000e+00 : f32
    %12 = vector.broadcast %cst_9 : f32 to vector<64x128xf32>
    %13 = arith.maximumf %11, %12 : vector<64x128xf32>
    %c0_10 = arith.constant 0 : index
    %c0_11 = arith.constant 0 : index
    %14 = vector.load %arg5[%c0_10, %c0_11] : memref<8x64xf32, #tpu.memory_space<vmem>>, vector<8x64xf32>
    %cst_12 = arith.constant dense<0.000000e+00> : vector<8x128xf32>
    %15 = tpu.matmul %14, %13, %cst_12 {dimension_numbers = #tpu.dot_dimension_numbers<[1], [0], [0], [1], [0, 0, 1, 1], [], []>} : vector<8x64xf32>, vector<64x128xf32>, vector<8x128xf32> -> vector<8x128xf32>
    %16 = vector.extract_strided_slice %15 {offsets = [0, 0], sizes = [1, 128], strides = [1, 1]} : vector<8x128xf32> to vector<1x128xf32>
    %c0_13 = arith.constant 0 : index
    %17 = memref.load %arg6[%c0_13] : memref<1xf32, #tpu.memory_space<smem>>
    %18 = vector.broadcast %17 : f32 to vector<1x128xf32>
    %19 = arith.addf %16, %18 : vector<1x128xf32>
    %cst_14 = arith.constant 0.000000e+00 : f32
    %20 = vector.broadcast %cst_14 : f32 to vector<1x128xf32>
    %21 = arith.maximumf %19, %20 : vector<1x128xf32>
    %22 = math.absf %19 : vector<1x128xf32>
    %cst_15 = arith.constant 0.000000e+00 : f32
    %23 = vector.broadcast %cst_15 : f32 to vector<1x128xf32>
    %24 = arith.subf %23, %22 : vector<1x128xf32>
    %25 = math.exp %24 : vector<1x128xf32>
    %26 = math.log1p %25 : vector<1x128xf32>
    %27 = arith.addf %21, %26 : vector<1x128xf32>
    %28 = arith.subf %19, %27 : vector<1x128xf32>
    %cst_16 = arith.constant 0.000000e+00 : f32
    %29 = vector.broadcast %cst_16 : f32 to vector<1x128xf32>
    %30 = arith.subf %29, %27 : vector<1x128xf32>
    %31 = math.exp %28 : vector<1x128xf32>
    %cst_17 = arith.constant -1.000000e+02 : f32
    %32 = vector.broadcast %cst_17 : f32 to vector<1x128xf32>
    %33 = arith.maximumf %30, %32 : vector<1x128xf32>
    %cst_18 = arith.constant -1.000000e+02 : f32
    %34 = vector.broadcast %cst_18 : f32 to vector<1x128xf32>
    %35 = arith.maximumf %28, %34 : vector<1x128xf32>
    %36 = arith.subf %35, %33 : vector<1x128xf32>
    %37 = arith.mulf %1, %36 : vector<1x128xf32>
    %38 = arith.addf %33, %37 : vector<1x128xf32>
    %cst_19 = arith.constant 0.000000e+00 : f32
    %39 = vector.broadcast %cst_19 : f32 to vector<1x128xf32>
    %40 = arith.subf %39, %38 : vector<1x128xf32>
    %c0_20 = arith.constant 0 : index
    %c0_21 = arith.constant 0 : index
    %41 = vector.load %arg7[%c0_20, %c0_21] : memref<2x128xf32, #tpu.memory_space<vmem>>, vector<1x128xf32>
    tpu.vector_store %arg7[%c0_20, %c0_21], %31 {strides = array<i32>} : memref<2x128xf32, #tpu.memory_space<vmem>>, vector<1x128xf32>,
    %c1 = arith.constant 1 : index
    %c0_22 = arith.constant 0 : index
    %42 = vector.load %arg7[%c1, %c0_22] : memref<2x128xf32, #tpu.memory_space<vmem>>, vector<1x128xf32>
    tpu.vector_store %arg7[%c1, %c0_22], %40 {strides = array<i32>} : memref<2x128xf32, #tpu.memory_space<vmem>>, vector<1x128xf32>,
    return
  }
  func.func @transform_0(%arg0: i32) -> (i32, i32) {
    %c0_i32 = arith.constant 0 : i32
    %c0_i32_0 = arith.constant 0 : i32
    return %c0_i32, %arg0 : i32, i32
  }
  func.func @transform_1(%arg0: i32) -> (i32, i32) {
    %c0_i32 = arith.constant 0 : i32
    %c0_i32_0 = arith.constant 0 : i32
    %c0_i32_1 = arith.constant 0 : i32
    return %c0_i32, %c0_i32_0 : i32, i32
  }
  func.func @transform_2(%arg0: i32) -> (i32, i32) {
    %c0_i32 = arith.constant 0 : i32
    %c0_i32_0 = arith.constant 0 : i32
    %c0_i32_1 = arith.constant 0 : i32
    return %c0_i32, %c0_i32_0 : i32, i32
  }
  func.func @transform_3(%arg0: i32) -> (i32, i32) {
    %c0_i32 = arith.constant 0 : i32
    %c0_i32_0 = arith.constant 0 : i32
    %c0_i32_1 = arith.constant 0 : i32
    return %c0_i32, %c0_i32_0 : i32, i32
  }
  func.func @transform_4(%arg0: i32) -> (i32, i32) {
    %c0_i32 = arith.constant 0 : i32
    %c0_i32_0 = arith.constant 0 : i32
    %c0_i32_1 = arith.constant 0 : i32
    return %c0_i32, %c0_i32_0 : i32, i32
  }
  func.func @transform_5(%arg0: i32) -> i32 {
    %c0_i32 = arith.constant 0 : i32
    %c0_i32_0 = arith.constant 0 : i32
    return %c0_i32 : i32
  }
  func.func @transform_6(%arg0: i32) -> (i32, i32) {
    %c0_i32 = arith.constant 0 : i32
    %c0_i32_0 = arith.constant 0 : i32
    return %c0_i32, %arg0 : i32, i32
  }
}

</mosaic_0001>

<llo_original>
// kernel: enc_c_forward.1
$region0: #{enc_c_forward.1}
  #allocation0 [shape = 'u32[]', space=smem, size = 0x4, offset = 0x4, fixed_abs, tag = 'smem constant byte address 0x4 - core index']
  #allocation1 [shape = 'u32[72,128]{1,0:T(1,128)}', space=vmem, size = 0x9000, scoped, tag = 'internal scratch']
  #allocation2 [shape = 'f32[1]{0:T(128)S(6)}', space=smem, size = 0x200, scoped, tag = 'scoped memory for enc_c_forward.1']
  %s0 = inlined_call_operand.vmem [shape: f32[8,128], index: 0, kind: input, shape index: {}]
  %s1 = inlined_call_operand.vmem [shape: f32[64,8], index: 1, kind: input, shape index: {}]
  %s2 = inlined_call_operand.vmem [shape: bf16[64,64], index: 2, kind: input, shape index: {}]
  %s3 = inlined_call_operand.vmem [shape: f32[64,1], index: 3, kind: input, shape index: {}]
  %s4 = inlined_call_operand.vmem [shape: f32[8,64], index: 4, kind: input, shape index: {}]
  %s5 = inlined_call_operand.<no memory space> [shape: f32[1], index: 5, kind: input, shape index: {}]
  %s6 = inlined_call_operand.vmem [shape: f32[2,128], index: 6, kind: output, shape index: {}]
  %s7 = sld [smem:[#allocation0]]
  $region34: #{enc_c_forward.1} parent=0
    _
  %s9 = ssub.s32 1, %s7
  %s10 = scalar_select 0, %s9, %s7
  %11 = sst [smem:[#allocation2]] %s5
  // Predicated region
  $region2: #{enc_c_forward.1} parent=0 // pred_check
    _
  $region3: #{enc_c_forward.1} parent=0 // pred_check_branch
    %13 = sbr.rel (0) target = $region5
  $region4: #{enc_c_forward.1} parent=0 // pred_region
    _
  $region5: #{enc_c_forward.1} parent=0 // pred_fallthru
    _
  // Predicated region
  $region6: #{enc_c_forward.1} parent=0 // pred_check
    _
  $region7: #{enc_c_forward.1} parent=0 // pred_check_branch
    %15 = sbr.rel (0) target = $region9
  $region8: #{enc_c_forward.1} parent=0 // pred_region
    _
  $region9: #{enc_c_forward.1} parent=0 // pred_fallthru
    _
  // Predicated region
  $region10: #{enc_c_forward.1} parent=0 // pred_check
    _
  $region11: #{enc_c_forward.1} parent=0 // pred_check_branch
    %17 = sbr.rel (0) target = $region13
  $region12: #{enc_c_forward.1} parent=0 // pred_region
    _
  $region13: #{enc_c_forward.1} parent=0 // pred_fallthru
    _
  // Predicated region
  $region14: #{enc_c_forward.1} parent=0 // pred_check
    _
  $region15: #{enc_c_forward.1} parent=0 // pred_check_branch
    %19 = sbr.rel (0) target = $region17
  $region16: #{enc_c_forward.1} parent=0 // pred_region
    _
  $region17: #{enc_c_forward.1} parent=0 // pred_fallthru
    _
  // Predicated region
  $region18: #{enc_c_forward.1} parent=0 // pred_check
    _
  $region19: #{enc_c_forward.1} parent=0 // pred_check_branch
    %21 = sbr.rel (0) target = $region21
  $region20: #{enc_c_forward.1} parent=0 // pred_region
    _
  $region21: #{enc_c_forward.1} parent=0 // pred_fallthru
    _
  // Predicated region
  $region22: #{enc_c_forward.1} parent=0 // pred_check
    _
  $region23: #{enc_c_forward.1} parent=0 // pred_check_branch
    %23 = sbr.rel (0) target = $region25
  $region24: #{enc_c_forward.1} parent=0 // pred_region
    _
  $region25: #{enc_c_forward.1} parent=0 // pred_fallthru
    _
  %v25 = vld [vmem:[%s0] sm:$0xff]
  %v26 = vld [vmem:[%s1] sm:$0xff]
  %v27 = vld [vmem:[%s1 + $0x8] sm:$0xff]
  %v28 = vld [vmem:[%s1 + $0x10] sm:$0xff]
  %v29 = vld [vmem:[%s1 + $0x18] sm:$0xff]
  %v30 = vld [vmem:[%s1 + $0x20] sm:$0xff]
  %v31 = vld [vmem:[%s1 + $0x28] sm:$0xff]
  %v32 = vld [vmem:[%s1 + $0x30] sm:$0xff]
  %v33 = vld [vmem:[%s1 + $0x38] sm:$0xff]
  %vm34 = vcmask 64512
  %v36 = vsel %vm34, %v26, 0
  %v39 = vsel %vm34, %v27, 0
  %v42 = vsel %vm34, %v28, 0
  %v45 = vsel %vm34, %v29, 0
  %v48 = vsel %vm34, %v30, 0
  %v51 = vsel %vm34, %v31, 0
  %v54 = vsel %vm34, %v32, 0
  %v57 = vsel %vm34, %v33, 0
  %59 = vmatpush.msra.mxu0 0.0
  %60 = vmatpush.msra.mxu0 0.0
  %61 = vmatpush.msra.mxu0 0.0
  %62 = vmatpush.msra.mxu0 0.0
  %63 = vmatpush.msra.mxu0 0.0
  %64 = vmatpush.msra.mxu0 0.0
  %65 = vmatpush.msra.mxu0 0.0
  %66 = vmatpush.msra.mxu0 0.0
  %67 = vmatpush.msra.mxu0 0.0
  %68 = vmatpush.msra.mxu0 0.0
  %69 = vmatpush.msra.mxu0 0.0
  %70 = vmatpush.msra.mxu0 0.0
  %71 = vmatpush.msra.mxu0 0.0
  %72 = vmatpush.msra.mxu0 0.0
  %73 = vmatpush.msra.mxu0 0.0
  %74 = vmatpush.msra.mxu0 %v25
  %75 = vmatmul.f32.gmra.mxu0 %v36
  %v76 = vpop.f32.mrf.mxu0
  %v77 = vadd.f32 0.0, %v76
  %78 = vmatmul.f32.gmra.mxu0 %v39
  %v79 = vpop.f32.mrf.mxu0
  %v80 = vadd.f32 0.0, %v79
  %81 = vmatmul.f32.gmra.mxu0 %v42
  %v82 = vpop.f32.mrf.mxu0
  %v83 = vadd.f32 0.0, %v82
  %84 = vmatmul.f32.gmra.mxu0 %v45
  %v85 = vpop.f32.mrf.mxu0
  %v86 = vadd.f32 0.0, %v85
  %87 = vmatmul.f32.gmra.mxu0 %v48
  %v88 = vpop.f32.mrf.mxu0
  %v89 = vadd.f32 0.0, %v88
  %90 = vmatmul.f32.gmra.mxu0 %v51
  %v91 = vpop.f32.mrf.mxu0
  %v92 = vadd.f32 0.0, %v91
  %93 = vmatmul.f32.gmra.mxu0 %v54
  %v94 = vpop.f32.mrf.mxu0
  %v95 = vadd.f32 0.0, %v94
  %96 = vmatmul.f32.gmra.mxu0 %v57
  %v97 = vpop.f32.mrf.mxu0
  %v98 = vadd.f32 0.0, %v97
  %99 = vdwg.mxu0
  %v100 = vmax.f32 %v77, 0.0
  %v101 = vmax.f32 %v80, 0.0
  %v102 = vmax.f32 %v83, 0.0
  %v103 = vmax.f32 %v86, 0.0
  %v104 = vmax.f32 %v89, 0.0
  %v105 = vmax.f32 %v92, 0.0
  %v106 = vmax.f32 %v95, 0.0
  %v107 = vmax.f32 %v98, 0.0
  %v108 = vld [vmem:[%s2] sm:$0xf]
  %v109 = vld [vmem:[%s2 + $0x4] sm:$0xf]
  %v110 = vld [vmem:[%s2 + $0x8] sm:$0xf]
  %v111 = vld [vmem:[%s2 + $0xc] sm:$0xf]
  %v112 = vld [vmem:[%s2 + $0x10] sm:$0xf]
  %v113 = vld [vmem:[%s2 + $0x14] sm:$0xf]
  %v114 = vld [vmem:[%s2 + $0x18] sm:$0xf]
  %v115 = vld [vmem:[%s2 + $0x1c] sm:$0xf]
  %v116 = vpack.c.bf16 %v101, %v100
  %v117 = vpack.c.bf16 %v103, %v102
  %v118 = vpack.c.bf16 %v105, %v104
  %v119 = vpack.c.bf16 %v107, %v106
  %v120 = vld [vmem:[%s3] sm:$0xff]
  %v121 = vld [vmem:[%s3 + $0x8] sm:$0xff]
  %v122 = vld [vmem:[%s3 + $0x10] sm:$0xff]
  %v123 = vld [vmem:[%s3 + $0x18] sm:$0xff]
  %v124 = vld [vmem:[%s3 + $0x20] sm:$0xff]
  %v125 = vld [vmem:[%s3 + $0x28] sm:$0xff]
  %v126 = vld [vmem:[%s3 + $0x30] sm:$0xff]
  %v127 = vld [vmem:[%s3 + $0x38] sm:$0xff]
  %129 = vset.pattern.permute.xlu0 0
  %130 = vperm.xlu0 %129, %v120
  %v131 = vpop.permute.xlu0 %130
  %134 = vset.pattern.permute.xlu0 0
  %135 = vperm.xlu0 %134, %v121
  %v136 = vpop.permute.xlu0 %135
  %139 = vset.pattern.permute.xlu0 0
  %140 = vperm.xlu0 %139, %v122
  %v141 = vpop.permute.xlu0 %140
  %144 = vset.pattern.permute.xlu0 0
  %145 = vperm.xlu0 %144, %v123
  %v146 = vpop.permute.xlu0 %145
  %149 = vset.pattern.permute.xlu0 0
  %150 = vperm.xlu0 %149, %v124
  %v151 = vpop.permute.xlu0 %150
  %154 = vset.pattern.permute.xlu0 0
  %155 = vperm.xlu0 %154, %v125
  %v156 = vpop.permute.xlu0 %155
  %159 = vset.pattern.permute.xlu0 0
  %160 = vperm.xlu0 %159, %v126
  %v161 = vpop.permute.xlu0 %160
  %164 = vset.pattern.permute.xlu0 0
  %165 = vperm.xlu0 %164, %v127
  %v166 = vpop.permute.xlu0 %165
  %v176 = vunpack.c.l.b16 %v108
  %v177 = vunpack.c.l.b16 %v109
  %v178 = vunpack.c.l.b16 %v110
  %v179 = vunpack.c.l.b16 %v111
  %v180 = vunpack.c.l.b16 %v112
  %v181 = vunpack.c.l.b16 %v113
  %v182 = vunpack.c.l.b16 %v114
  %v183 = vunpack.c.l.b16 %v115
  %v184 = vpack.c.b16 %v177, %v176
  %v185 = vpack.c.b16 %v179, %v178
  %v186 = vpack.c.b16 %v181, %v180
  %v187 = vpack.c.b16 %v183, %v182
  %vm188 = vcmask 523264
  %v190 = vsel %vm188, %v184, 0
  %v193 = vsel %vm188, %v185, 0
  %v196 = vsel %vm188, %v186, 0
  %v199 = vsel %vm188, %v187, 0
  %201 = vmatpush.bf16.msra.mxu0 0
  %202 = vmatpush.bf16.msra.mxu0 0
  %203 = vmatpush.bf16.msra.mxu0 0
  %204 = vmatpush.bf16.msra.mxu0 0
  %205 = vmatpush.bf16.msra.mxu0 %v119
  %206 = vmatpush.bf16.msra.mxu0 %v118
  %207 = vmatpush.bf16.msra.mxu0 %v117
  %208 = vmatpush.bf16.msra.mxu0 %v116
  %209 = vmatmul.bf16.gmra.mxu0 %v190
  %v210 = vpop.f32.mrf.mxu0
  %v211 = vadd.f32 %v131, %v210
  %v212 = vpop.f32.mrf.mxu0
  %v213 = vadd.f32 %v136, %v212
  %214 = vmatmul.bf16.gmra.mxu0 %v193
  %v215 = vpop.f32.mrf.mxu0
  %v216 = vadd.f32 %v141, %v215
  %v217 = vpop.f32.mrf.mxu0
  %v218 = vadd.f32 %v146, %v217
  %219 = vmatmul.bf16.gmra.mxu0 %v196
  %v220 = vpop.f32.mrf.mxu0
  %v221 = vadd.f32 %v151, %v220
  %v222 = vpop.f32.mrf.mxu0
  %v223 = vadd.f32 %v156, %v222
  %224 = vmatmul.bf16.gmra.mxu0 %v199
  %v225 = vpop.f32.mrf.mxu0
  %v226 = vadd.f32 %v161, %v225
  %v227 = vpop.f32.mrf.mxu0
  %v228 = vadd.f32 %v166, %v227
  %229 = vdwg.mxu0
  %v230 = vmax.f32 %v211, 0.0
  %v231 = vmax.f32 %v213, 0.0
  %v232 = vmax.f32 %v216, 0.0
  %v233 = vmax.f32 %v218, 0.0
  %v234 = vmax.f32 %v221, 0.0
  %v235 = vmax.f32 %v223, 0.0
  %v236 = vmax.f32 %v226, 0.0
  %v237 = vmax.f32 %v228, 0.0
  %v238 = vld [vmem:[%s4] sm:$0xff]
  %v240 = vsel %vm188, %v238, 0
  %242 = vmatpush.msra.mxu0 0.0
  %243 = vmatpush.msra.mxu0 0.0
  %244 = vmatpush.msra.mxu0 0.0
  %245 = vmatpush.msra.mxu0 0.0
  %246 = vmatpush.msra.mxu0 0.0
  %247 = vmatpush.msra.mxu0 0.0
  %248 = vmatpush.msra.mxu0 0.0
  %249 = vmatpush.msra.mxu0 0.0
  %250 = vmatpush.msra.mxu0 %v237
  %251 = vmatpush.msra.mxu0 %v236
  %252 = vmatpush.msra.mxu0 %v235
  %253 = vmatpush.msra.mxu0 %v234
  %254 = vmatpush.msra.mxu0 %v233
  %255 = vmatpush.msra.mxu0 %v232
  %256 = vmatpush.msra.mxu0 %v231
  %257 = vmatpush.msra.mxu0 %v230
  %258 = vmatmul.f32.gmra.mxu0 %v240
  %v259 = vpop.f32.mrf.mxu0
  %v260 = vadd.f32 0.0, %v259
  %261 = vdwg.mxu0
  %s262 = sld [smem:[#allocation2]]
  %v263 = vstv %s262
  %v264 = vadd.f32 %v260, %v263
  %v265 = vmax.f32 %v264, 0.0
  %v266 = vand.u32 2147483647, %v264
  %v267 = vsub.f32 0.0, %v266
  %v268 = vmul.f32 %v267, 1.442695
  %v269 = vpow.pop %v268
  %v270 = vadd.f32 %v269, 1.0
  %v271 = vlog2.pop %v270
  %v272 = vmul.f32 %v271, 0.6931472
  %v273 = vmul.f32 -0.5, %v269
  %v274 = vadd.f32 %v273, 1.0
  %v275 = vmul.f32 %v274, %v269
  %v276 = vand.u32 2147483647, %v269
  %vm277 = vcmp.lt.f32.partialorder %v276, 0.0004427343
  %v278 = vsel %vm277, %v275, %v272
  %v279 = vadd.f32 %v265, %v278
  %v280 = vsub.f32 %v264, %v279
  %v281 = vsub.f32 0.0, %v279
  %v282 = vmul.f32 %v280, 1.442695
  %v283 = vpow.pop %v282
  %v284 = vmax.f32 %v281, -100.0
  %v285 = vmax.f32 %v280, -100.0
  %v286 = vsub.f32 %v285, %v284
  %v288 = vrot.slane %v286, 6
  %v290 = vmul.f32 %v25, %v288
  %v292 = vrot.slane %v290, 2
  %v294 = vadd.f32 %v284, %v292
  %v295 = vsub.f32 0.0, %v294
  %296 = vst [vmem:[%s6] sm:$0x1] %v283
  %297 = vst [vmem:[%s6 + $0x1] sm:$0x1] %v295
  // Predicated region
  $region26: #{enc_c_forward.1} parent=0 // pred_check
    _
  $region27: #{enc_c_forward.1} parent=0 // pred_check_branch
    %299 = sbr.rel (0) target = $region29
  $region28: #{enc_c_forward.1} parent=0 // pred_region
    _
  $region29: #{enc_c_forward.1} parent=0 // pred_fallthru
    _
  // Predicated region
  $region30: #{enc_c_forward.1} parent=0 // pred_check
    _
  $region31: #{enc_c_forward.1} parent=0 // pred_check_branch
    %301 = sbr.rel (0) target = $region33
  $region32: #{enc_c_forward.1} parent=0 // pred_region
    _
  $region33: #{enc_c_forward.1} parent=0 // pred_fallthru
    _

</llo_original>
